<compile_context>
chip_gen: v7x
topology: tpu7x:2x2x1
jax: 0.10.0
libtpu: 0.0.40
codegen_flags: <defaults>
</compile_context>

<pallas_src>
import math
import functools

import jax
import jax.numpy as jnp
from jax.experimental import pallas as pl
from jax.experimental.pallas import tpu as pltpu


def _fourier_kernel(x_ref, fp_ref, o_ref, *, total_gain, tb, x_resident):
    # x_ref:  (Bp, 1) [resident] or (tb, 1) [per-step], input dtype
    # fp_ref: (2, D)  f32, resident across all grid steps (row 0 = freqs,
    #                 row 1 = phases)
    # o_ref:  (tb, D) input dtype (lane-dense output block)
    if x_resident:
        start = pl.multiple_of(pl.program_id(0) * tb, tb)
        x = x_ref[pl.ds(start, tb), :]
    else:
        x = x_ref[...]
    x = x.astype(jnp.float32)          # upcast in-kernel, (tb, 1)
    f = fp_ref[0:1, :]                 # (1, D) f32
    p = fp_ref[1:2, :]                 # (1, D) f32
    y = jnp.cos(x * f + p)             # broadcast outer product + cos (EUP)
    if total_gain != 1.0:              # Python-level constant fold
        y = y * jnp.float32(total_gain)
    o_ref[...] = y.astype(o_ref.dtype)


def fourier_features(x, freqs, phases, *, normalize=False, gain=1.0, tb=None):
    """FourierFeatures forward. x: [B]. Returns [B, D] in x.dtype."""
    in_dtype = x.dtype
    B = x.shape[0]
    D = freqs.shape[0]
    total_gain = (math.sqrt(2.0) if normalize else 1.0) * float(gain)

    itemsize = jnp.dtype(in_dtype).itemsize
    pack = max(8, 32 // itemsize)        # sublane packing of the output dtype

    if tb is None:
        # ~4 MiB per output buffer (double-buffered -> ~8 MiB), capped at
        # 2048 rows, never below one packing unit.  Fits the default scoped
        # VMEM limit on all of v5e / v6e / v7x with room to spare.
        target_bytes = 4 * 1024 * 1024
        tb = max(pack, min(2048, target_bytes // max(D * itemsize, 1)))
    tb = ((tb + pack - 1) // pack) * pack            # align to sublane packing
    tb = min(tb, ((B + pack - 1) // pack) * pack)    # never exceed padded B

    Bp = ((B + tb - 1) // tb) * tb                   # pad batch to tile mult
    x2 = x.reshape(B, 1)                             # no dtype cast here
    if Bp != B:
        x2 = jnp.pad(x2, ((0, Bp - B), (0, 0)))      # tiny: B scalars
    # Stack freqs/phases into one resident (2, D) f32 block -> one DMA total.
    fp = jnp.stack(
        [freqs.astype(jnp.float32), phases.astype(jnp.float32)], axis=0)

    # Keep the whole x resident in VMEM (one DMA total) when small; otherwise
    # stream a skinny (tb, 1) column per step.
    x_resident = Bp * itemsize <= 2 * 1024 * 1024
    if x_resident:
        x_spec = pl.BlockSpec((Bp, 1), lambda i: (0, 0))
    else:
        x_spec = pl.BlockSpec((tb, 1), lambda i: (i, 0))

    kernel = functools.partial(_fourier_kernel, total_gain=total_gain,
                               tb=tb, x_resident=x_resident)

    out = pl.pallas_call(
        kernel,
        out_shape=jax.ShapeDtypeStruct((Bp, D), in_dtype),
        grid_spec=pltpu.PrefetchScalarGridSpec(
            num_scalar_prefetch=0,
            grid=(Bp // tb,),
            in_specs=[
                x_spec,
                pl.BlockSpec((2, D), lambda i: (0, 0)),   # freqs+phases
            ],
            out_specs=pl.BlockSpec((tb, D), lambda i: (i, 0)),
        ),
        compiler_params=pltpu.CompilerParams(
            dimension_semantics=("parallel",)),
    )(x2, fp)
    if Bp != B:
        out = out[:B]
    return out


def fourier_features_ref(x, freqs, phases, *, normalize=False, gain=1.0):
    """Pure-JAX reference mirroring the PyTorch forward."""
    in_dtype = x.dtype
    total_gain = (math.sqrt(2.0) if normalize else 1.0) * float(gain)
    xf = x.astype(jnp.float32)
    y = jnp.cos(xf[:, None] * freqs.astype(jnp.float32)[None, :]
                + phases.astype(jnp.float32)[None, :]) * total_gain
    return y.astype(in_dtype)


if __name__ == "__main__":
    # Deterministic "module init": num_channels=256, bandwidth=0.5, normalize=True
    num_channels = 256
    bandwidth = 0.5
    normalize = True

    key = jax.random.PRNGKey(0)
    k_f, k_p, k_x = jax.random.split(key, 3)
    freqs = 2.0 * jnp.pi * bandwidth * jax.random.normal(
        k_f, (num_channels,), dtype=jnp.float32)
    phases = 2.0 * jnp.pi * jax.random.uniform(
        k_p, (num_channels,), dtype=jnp.float32)

    # Input: [B] vector (the module maps [B] -> [B, D] via torch.ger).
    # B deliberately not a multiple of the tile to exercise the padding path.
    B = 10
    x = jax.random.normal(k_x, (B,), dtype=jnp.float32)

    out = fourier_features(x, freqs, phases, normalize=normalize, gain=1.0)
    out = jax.block_until_ready(out)

    ref = fourier_features_ref(x, freqs, phases, normalize=normalize, gain=1.0)
    assert out.shape == (B, num_channels)
    assert out.dtype == x.dtype
    assert jnp.allclose(out, ref, atol=1e-5, rtol=1e-5)

    print("KERNEL_OK")
</pallas_src>

<mosaic_0001>
module attributes {stable_mosaic.version = 11 : i64} {
  func.func @_fourier_kernel(%arg0: i32, %arg1: memref<16x1xf32, #tpu.memory_space<vmem>>, %arg2: memref<2x256xf32, #tpu.memory_space<vmem>>, %arg3: memref<16x256xf32, #tpu.memory_space<vmem>>) attributes {dimension_semantics = [#tpu.dimension_semantics<parallel>], iteration_bounds = array<i64: 1>, scalar_prefetch = 0 : i64, scratch_operands = 0 : i64, tpu.core_type = #tpu.core_type<tc>, window_params = [{pipeline_mode = #tpu.pipeline_mode<synchronous>, transform_indices = @transform_0, window_bounds = array<i64: 16, 1>}, {pipeline_mode = #tpu.pipeline_mode<synchronous>, transform_indices = @transform_1, window_bounds = array<i64: 2, 256>}, {transform_indices = @transform_2, window_bounds = array<i64: 16, 256>}]} {
    %c16_i32 = arith.constant 16 : i32
    %0 = arith.muli %arg0, %c16_i32 : i32
    %1 = tpu.assume_multiple %0, 16 : i32
    %2 = arith.index_cast %1 : i32 to index
    %c0 = arith.constant 0 : index
    %3 = vector.load %arg1[%2, %c0] : memref<16x1xf32, #tpu.memory_space<vmem>>, vector<16x1xf32>
    %c0_0 = arith.constant 0 : index
    %c0_1 = arith.constant 0 : index
    %4 = vector.load %arg2[%c0_0, %c0_1] : memref<2x256xf32, #tpu.memory_space<vmem>>, vector<1x256xf32>
    %c1 = arith.constant 1 : index
    %c0_2 = arith.constant 0 : index
    %5 = vector.load %arg2[%c1, %c0_2] : memref<2x256xf32, #tpu.memory_space<vmem>>, vector<1x256xf32>
    %6 = vector.broadcast %3 : vector<16x1xf32> to vector<16x256xf32>
    %7 = vector.broadcast %4 : vector<1x256xf32> to vector<16x256xf32>
    %8 = arith.mulf %6, %7 : vector<16x256xf32>
    %9 = vector.broadcast %5 : vector<1x256xf32> to vector<16x256xf32>
    %10 = arith.addf %8, %9 : vector<16x256xf32>
    %11 = math.cos %10 : vector<16x256xf32>
    %cst = arith.constant 1.41421354 : f32
    %12 = vector.broadcast %cst : f32 to vector<16x256xf32>
    %13 = arith.mulf %11, %12 : vector<16x256xf32>
    %c0_3 = arith.constant 0 : index
    %c0_4 = arith.constant 0 : index
    %14 = vector.load %arg3[%c0_3, %c0_4] : memref<16x256xf32, #tpu.memory_space<vmem>>, vector<16x256xf32>
    tpu.vector_store %arg3[%c0_3, %c0_4], %13 {strides = array<i32>} : memref<16x256xf32, #tpu.memory_space<vmem>>, vector<16x256xf32>,
    return
  }
  func.func @transform_0(%arg0: i32) -> (i32, i32) {
    %c0_i32 = arith.constant 0 : i32
    %c0_i32_0 = arith.constant 0 : i32
    %c0_i32_1 = arith.constant 0 : i32
    return %c0_i32, %c0_i32_0 : i32, i32
  }
  func.func @transform_1(%arg0: i32) -> (i32, i32) {
    %c0_i32 = arith.constant 0 : i32
    %c0_i32_0 = arith.constant 0 : i32
    %c0_i32_1 = arith.constant 0 : i32
    return %c0_i32, %c0_i32_0 : i32, i32
  }
  func.func @transform_2(%arg0: i32) -> (i32, i32) {
    %c0_i32 = arith.constant 0 : i32
    %c0_i32_0 = arith.constant 0 : i32
    return %arg0, %c0_i32 : i32, i32
  }
}

</mosaic_0001>

<llo_original>
// kernel: tpu_custom_call.1
$region0: #{tpu_custom_call.1}
  #allocation0 [shape = 'u32[]', space=smem, size = 0x4, offset = 0x4, fixed_abs, tag = 'smem constant byte address 0x4 - core index']
  #allocation1 [shape = 'u32[144,128]{1,0:T(1,128)}', space=vmem, size = 0x12000, scoped, tag = 'internal scratch']
  %s0 = inlined_call_operand.vmem [shape: f32[16,1], index: 0, kind: input, shape index: {}]
  %s1 = inlined_call_operand.vmem [shape: f32[2,256], index: 1, kind: input, shape index: {}]
  %s2 = inlined_call_operand.hbm [shape: f32[16,256], index: 2, kind: output, shape index: {}]
  %s3 = sld [smem:[#allocation0]]
  $region18: #{tpu_custom_call.1} parent=0
    _
  %s5 = ssub.s32 1, %s3
  %s6 = scalar_select 0, %s5, %s3
  $region1: #{tpu_custom_call.1} parent=0
    #allocation2 [shape = 'u8[16384]{0}', space=vmem, size = 0x4000, scoped, tag = 'output window, operand 0, single buffered']
    #allocation3 [shape = 's32[1]{0}', space=sflag, size = 0x4, scoped, tag = 'scoped memory for tpu_custom_call.1']
    %7 = vsyncpa [#allocation3], 0
    // Predicated region
    $region2: #{tpu_custom_call.1} parent=1 // pred_check
      _
    $region3: #{tpu_custom_call.1} parent=1 // pred_check_branch
      %9 = sbr.rel (0) target = $region5
    $region4: #{tpu_custom_call.1} parent=1 // pred_region
      _
    $region5: #{tpu_custom_call.1} parent=1 // pred_fallthru
      _
    // Predicated region
    $region6: #{tpu_custom_call.1} parent=1 // pred_check
      _
    $region7: #{tpu_custom_call.1} parent=1 // pred_check_branch
      %11 = sbr.rel (0) target = $region9
    $region8: #{tpu_custom_call.1} parent=1 // pred_region
      _
    $region9: #{tpu_custom_call.1} parent=1 // pred_fallthru
      _
    %s12 = smul.u32 0, 16
    %s13 = scalar_lea.vmem %s0, %s12
    %v14 = vld [vmem:[%s13] sm:$0xff]
    %v15 = vld [vmem:[%s13 + $0x8] sm:$0xff]
    %v16 = vld [vmem:[%s1] ss:$2 sm:$0x3]
    %s17 = scalar_lea.vmem %s1, 1
    %v18 = vld [vmem:[%s17] ss:$2 sm:$0x3]
    %20 = vset.pattern.permute.xlu0 0
    %21 = vperm.xlu0 %20, %v14
    %v22 = vpop.permute.xlu0 %21
    %25 = vset.pattern.permute.xlu0 0
    %26 = vperm.xlu0 %25, %v15
    %v27 = vpop.permute.xlu0 %26
    %v30 = vlaneseq
    %v31 = vshrl.u32 %v30, 7
    %v32 = vsub.s32 0, %v31
    %v33 = vrot.slane %v16, %v32
    %v34 = vlaneseq
    %v35 = vshrl.u32 %v34, 7
    %v36 = vsub.s32 1, %v35
    %v37 = vrot.slane %v16, %v36
    %v40 = vmul.f32 %v22, %v33
    %v41 = vmul.f32 %v22, %v37
    %v42 = vmul.f32 %v27, %v33
    %v43 = vmul.f32 %v27, %v37
    %v45 = vlaneseq
    %v46 = vshrl.u32 %v45, 7
    %v47 = vsub.s32 0, %v46
    %v48 = vrot.slane %v18, %v47
    %v49 = vlaneseq
    %v50 = vshrl.u32 %v49, 7
    %v51 = vsub.s32 1, %v50
    %v52 = vrot.slane %v18, %v51
    %v55 = vadd.f32 %v40, %v48
    %v56 = vadd.f32 %v41, %v52
    %v57 = vadd.f32 %v42, %v48
    %v58 = vadd.f32 %v43, %v52
    %v59 = vand.u32 2147483647, %v55
    %vm60 = vcmp.le.f32.partialorder %v59, 0.7853982
    %vm61 = vcmp.lt.s32.totalorder %v55, 0
    %v62 = vand.u32 %v55, 2139095040
    %v63 = vshrl.u32 %v62, 23
    %v64 = vsub.s32 %v63, 127
    %v65 = vand.u32 2147483647, %v55
    %v66 = vand.u32 %v65, 8388607
    %v67 = vor.u32 %v66, 8388608
    %v68 = vsub.s32 0, %v67
    %v69 = vadd.s32 %v64, 1
    %vm70 = vcmp.gt.s32.totalorder %v69, 0
    %v71 = vsel %vm70, %v69, 0
    %v72 = vshrl.u32 %v71, 5
    %v73 = vand.u32 %v71, 31
    %v74 = vsub.s32 32, %v73
    %v75 = vshrl.u32 683565275, %v74
    %v76 = vshll.u32 683565275, %v73
    %v77 = vshrl.u32 2475754826, %v74
    %v78 = vor.u32 %v76, %v77
    %v79 = vshll.u32 2475754826, %v73
    %v80 = vshrl.u32 2131351028, %v74
    %v81 = vor.u32 %v79, %v80
    %v82 = vshll.u32 2131351028, %v73
    %v83 = vshrl.u32 2102212464, %v74
    %v84 = vor.u32 %v82, %v83
    %v85 = vshll.u32 2102212464, %v73
    %v86 = vshrl.u32 920167782, %v74
    %v87 = vor.u32 %v85, %v86
    %v88 = vshll.u32 920167782, %v73
    %v89 = vshrl.u32 1326507024, %v74
    %v90 = vor.u32 %v88, %v89
    %vm91 = vcmp.lt.s32.totalorder %v72, 1
    %vm92 = vcmp.lt.s32.totalorder %v72, 2
    %vm93 = vcmp.lt.s32.totalorder %v72, 3
    %vm94 = vcmp.lt.s32.totalorder %v72, 4
    %v95 = vsel %vm91, %v75, %v78
    %v96 = vsel %vm94, %v84, 2102212464
    %v97 = vsel %vm93, %v81, %v96
    %v98 = vsel %vm92, %v95, %v97
    %v99 = vsel %vm91, %v78, %v81
    %v100 = vsel %vm94, %v87, 920167782
    %v101 = vsel %vm93, %v84, %v100
    %v102 = vsel %vm92, %v99, %v101
    %v103 = vsel %vm91, %v81, %v84
    %v104 = vsel %vm94, %v90, 1326507024
    %v105 = vsel %vm93, %v87, %v104
    %v106 = vsel %vm92, %v103, %v105
    %v107 = vshll.u32 %v67, 8
    %v108 = vmul.u32.u64.compose %v107, %v106
    %v109 = vextract.low.u32 %v108
    %v110 = vextract.high.u32 %v108
    %v111 = vmul.u32.u64.compose %v107, %v102
    %v112 = vextract.low.u32 %v111
    %v113 = vextract.high.u32 %v111
    %v114 = vmul.u32 %v107, %v98
    %v115 = vadd.s32 %v110, %v112
    %vm116 = vc.u32 %v110, %v112
    %v117 = vadd.s32 %v113, 1
    %v118 = vsel %vm116, %v117, %v113
    %v119 = vadd.s32 %v114, %v118
    %v120 = vadd.s32 %v119, 536870912
    %v121 = vshrl.u32 %v120, 30
    %v122 = vshll.u32 %v121, 30
    %v123 = vsub.s32 %v119, %v122
    %vm124 = vcmp.lt.s32.totalorder %v123, 0
    %v125 = vsub.s32 0, %v123
    %v126 = vsel %vm124, %v125, %v123
    %v127 = vclz %v126
    %v128 = vsub.s32 %v127, 2
    %vm129 = vcmp.gt.s32.totalorder 0, %v128
    %v130 = vsel %vm129, 0, %v128
    %v131 = vsub.s32 32, %v130
    %v132 = vshll.u32 %v123, %v130
    %v133 = vshrl.u32 %v115, %v131
    %v134 = vor.u32 %v132, %v133
    %v135 = vsub.s32 4294967266, %v130
    %v136 = vadd.s32 %v135, 127
    %v137 = vshll.u32 %v136, 23
    %v138 = vor.u32 4788187, %v137
    %v139 = vand.u32 2147483647, %v138
    %v141 = vcvt.s32.f32 %v134
    %v142 = vmul.f32 %v141, %v139
    %v143 = vxor.u32 %v142, 2147483648
    %v144 = vsel %vm61, %v143, %v142
    %v145 = vsub.s32 4, %v121
    %v146 = vsel %vm61, %v145, %v121
    %v147 = vsel %vm60, %v55, %v144
    %v148 = vsel %vm60, 0, %v146
    %v149 = vcosq.f32.pop %v147
    %v150 = vsinq.f32.pop %v147
    %vm151 = vweird.f32 %v55
    %v152 = vand.u32 %v148, 3
    %vm153 = vcmp.lt.s32.totalorder %v152, 2
    %vm154 = vcmp.eq.s32.totalorder %v152, 0
    %v155 = vxor.u32 %v150, 2147483648
    %v156 = vsel %vm154, %v149, %v155
    %vm157 = vcmp.eq.s32.totalorder %v152, 2
    %v158 = vxor.u32 %v149, 2147483648
    %v159 = vsel %vm157, %v158, %v150
    %v160 = vsel %vm153, %v156, %v159
    %v161 = vsel %vm151, nan, %v160
    %v162 = vand.u32 2147483647, %v56
    %vm163 = vcmp.le.f32.partialorder %v162, 0.7853982
    %vm164 = vcmp.lt.s32.totalorder %v56, 0
    %v165 = vand.u32 %v56, 2139095040
    %v166 = vshrl.u32 %v165, 23
    %v167 = vsub.s32 %v166, 127
    %v168 = vand.u32 2147483647, %v56
    %v169 = vand.u32 %v168, 8388607
    %v170 = vor.u32 %v169, 8388608
    %v171 = vsub.s32 0, %v170
    %v172 = vadd.s32 %v167, 1
    %vm173 = vcmp.gt.s32.totalorder %v172, 0
    %v174 = vsel %vm173, %v172, 0
    %v175 = vshrl.u32 %v174, 5
    %v176 = vand.u32 %v174, 31
    %v177 = vsub.s32 32, %v176
    %v178 = vshrl.u32 683565275, %v177
    %v179 = vshll.u32 683565275, %v176
    %v180 = vshrl.u32 2475754826, %v177
    %v181 = vor.u32 %v179, %v180
    %v182 = vshll.u32 2475754826, %v176
    %v183 = vshrl.u32 2131351028, %v177
    %v184 = vor.u32 %v182, %v183
    %v185 = vshll.u32 2131351028, %v176
    %v186 = vshrl.u32 2102212464, %v177
    %v187 = vor.u32 %v185, %v186
    %v188 = vshll.u32 2102212464, %v176
    %v189 = vshrl.u32 920167782, %v177
    %v190 = vor.u32 %v188, %v189
    %v191 = vshll.u32 920167782, %v176
    %v192 = vshrl.u32 1326507024, %v177
    %v193 = vor.u32 %v191, %v192
    %vm194 = vcmp.lt.s32.totalorder %v175, 1
    %vm195 = vcmp.lt.s32.totalorder %v175, 2
    %vm196 = vcmp.lt.s32.totalorder %v175, 3
    %vm197 = vcmp.lt.s32.totalorder %v175, 4
    %v198 = vsel %vm194, %v178, %v181
    %v199 = vsel %vm197, %v187, 2102212464
    %v200 = vsel %vm196, %v184, %v199
    %v201 = vsel %vm195, %v198, %v200
    %v202 = vsel %vm194, %v181, %v184
    %v203 = vsel %vm197, %v190, 920167782
    %v204 = vsel %vm196, %v187, %v203
    %v205 = vsel %vm195, %v202, %v204
    %v206 = vsel %vm194, %v184, %v187
    %v207 = vsel %vm197, %v193, 1326507024
    %v208 = vsel %vm196, %v190, %v207
    %v209 = vsel %vm195, %v206, %v208
    %v210 = vshll.u32 %v170, 8
    %v211 = vmul.u32.u64.compose %v210, %v209
    %v212 = vextract.low.u32 %v211
    %v213 = vextract.high.u32 %v211
    %v214 = vmul.u32.u64.compose %v210, %v205
    %v215 = vextract.low.u32 %v214
    %v216 = vextract.high.u32 %v214
    %v217 = vmul.u32 %v210, %v201
    %v218 = vadd.s32 %v213, %v215
    %vm219 = vc.u32 %v213, %v215
    %v220 = vadd.s32 %v216, 1
    %v221 = vsel %vm219, %v220, %v216
    %v222 = vadd.s32 %v217, %v221
    %v223 = vadd.s32 %v222, 536870912
    %v224 = vshrl.u32 %v223, 30
    %v225 = vshll.u32 %v224, 30
    %v226 = vsub.s32 %v222, %v225
    %vm227 = vcmp.lt.s32.totalorder %v226, 0
    %v228 = vsub.s32 0, %v226
    %v229 = vsel %vm227, %v228, %v226
    %v230 = vclz %v229
    %v231 = vsub.s32 %v230, 2
    %vm232 = vcmp.gt.s32.totalorder 0, %v231
    %v233 = vsel %vm232, 0, %v231
    %v234 = vsub.s32 32, %v233
    %v235 = vshll.u32 %v226, %v233
    %v236 = vshrl.u32 %v218, %v234
    %v237 = vor.u32 %v235, %v236
    %v238 = vsub.s32 4294967266, %v233
    %v239 = vadd.s32 %v238, 127
    %v240 = vshll.u32 %v239, 23
    %v241 = vor.u32 4788187, %v240
    %v242 = vand.u32 2147483647, %v241
    %v244 = vcvt.s32.f32 %v237
    %v245 = vmul.f32 %v244, %v242
    %v246 = vxor.u32 %v245, 2147483648
    %v247 = vsel %vm164, %v246, %v245
    %v248 = vsub.s32 4, %v224
    %v249 = vsel %vm164, %v248, %v224
    %v250 = vsel %vm163, %v56, %v247
    %v251 = vsel %vm163, 0, %v249
    %v252 = vcosq.f32.pop %v250
    %v253 = vsinq.f32.pop %v250
    %vm254 = vweird.f32 %v56
    %v255 = vand.u32 %v251, 3
    %vm256 = vcmp.lt.s32.totalorder %v255, 2
    %vm257 = vcmp.eq.s32.totalorder %v255, 0
    %v258 = vxor.u32 %v253, 2147483648
    %v259 = vsel %vm257, %v252, %v258
    %vm260 = vcmp.eq.s32.totalorder %v255, 2
    %v261 = vxor.u32 %v252, 2147483648
    %v262 = vsel %vm260, %v261, %v253
    %v263 = vsel %vm256, %v259, %v262
    %v264 = vsel %vm254, nan, %v263
    %v265 = vand.u32 2147483647, %v57
    %vm266 = vcmp.le.f32.partialorder %v265, 0.7853982
    %vm267 = vcmp.lt.s32.totalorder %v57, 0
    %v268 = vand.u32 %v57, 2139095040
    %v269 = vshrl.u32 %v268, 23
    %v270 = vsub.s32 %v269, 127
    %v271 = vand.u32 2147483647, %v57
    %v272 = vand.u32 %v271, 8388607
    %v273 = vor.u32 %v272, 8388608
    %v274 = vsub.s32 0, %v273
    %v275 = vadd.s32 %v270, 1
    %vm276 = vcmp.gt.s32.totalorder %v275, 0
    %v277 = vsel %vm276, %v275, 0
    %v278 = vshrl.u32 %v277, 5
    %v279 = vand.u32 %v277, 31
    %v280 = vsub.s32 32, %v279
    %v281 = vshrl.u32 683565275, %v280
    %v282 = vshll.u32 683565275, %v279
    %v283 = vshrl.u32 2475754826, %v280
    %v284 = vor.u32 %v282, %v283
    %v285 = vshll.u32 2475754826, %v279
    %v286 = vshrl.u32 2131351028, %v280
    %v287 = vor.u32 %v285, %v286
    %v288 = vshll.u32 2131351028, %v279
    %v289 = vshrl.u32 2102212464, %v280
    %v290 = vor.u32 %v288, %v289
    %v291 = vshll.u32 2102212464, %v279
    %v292 = vshrl.u32 920167782, %v280
    %v293 = vor.u32 %v291, %v292
    %v294 = vshll.u32 920167782, %v279
    %v295 = vshrl.u32 1326507024, %v280
    %v296 = vor.u32 %v294, %v295
    %vm297 = vcmp.lt.s32.totalorder %v278, 1
    %vm298 = vcmp.lt.s32.totalorder %v278, 2
    %vm299 = vcmp.lt.s32.totalorder %v278, 3
    %vm300 = vcmp.lt.s32.totalorder %v278, 4
    %v301 = vsel %vm297, %v281, %v284
    %v302 = vsel %vm300, %v290, 2102212464
    %v303 = vsel %vm299, %v287, %v302
    %v304 = vsel %vm298, %v301, %v303
    %v305 = vsel %vm297, %v284, %v287
    %v306 = vsel %vm300, %v293, 920167782
    %v307 = vsel %vm299, %v290, %v306
    %v308 = vsel %vm298, %v305, %v307
    %v309 = vsel %vm297, %v287, %v290
    %v310 = vsel %vm300, %v296, 1326507024
    %v311 = vsel %vm299, %v293, %v310
    %v312 = vsel %vm298, %v309, %v311
    %v313 = vshll.u32 %v273, 8
    %v314 = vmul.u32.u64.compose %v313, %v312
    %v315 = vextract.low.u32 %v314
    %v316 = vextract.high.u32 %v314
    %v317 = vmul.u32.u64.compose %v313, %v308
    %v318 = vextract.low.u32 %v317
    %v319 = vextract.high.u32 %v317
    %v320 = vmul.u32 %v313, %v304
    %v321 = vadd.s32 %v316, %v318
    %vm322 = vc.u32 %v316, %v318
    %v323 = vadd.s32 %v319, 1
    %v324 = vsel %vm322, %v323, %v319
    %v325 = vadd.s32 %v320, %v324
    %v326 = vadd.s32 %v325, 536870912
    %v327 = vshrl.u32 %v326, 30
    %v328 = vshll.u32 %v327, 30
    %v329 = vsub.s32 %v325, %v328
    %vm330 = vcmp.lt.s32.totalorder %v329, 0
    %v331 = vsub.s32 0, %v329
    %v332 = vsel %vm330, %v331, %v329
    %v333 = vclz %v332
    %v334 = vsub.s32 %v333, 2
    %vm335 = vcmp.gt.s32.totalorder 0, %v334
    %v336 = vsel %vm335, 0, %v334
    %v337 = vsub.s32 32, %v336
    %v338 = vshll.u32 %v329, %v336
    %v339 = vshrl.u32 %v321, %v337
    %v340 = vor.u32 %v338, %v339
    %v341 = vsub.s32 4294967266, %v336
    %v342 = vadd.s32 %v341, 127
    %v343 = vshll.u32 %v342, 23
    %v344 = vor.u32 4788187, %v343
    %v345 = vand.u32 2147483647, %v344
    %v347 = vcvt.s32.f32 %v340
    %v348 = vmul.f32 %v347, %v345
    %v349 = vxor.u32 %v348, 2147483648
    %v350 = vsel %vm267, %v349, %v348
    %v351 = vsub.s32 4, %v327
    %v352 = vsel %vm267, %v351, %v327
    %v353 = vsel %vm266, %v57, %v350
    %v354 = vsel %vm266, 0, %v352
    %v355 = vcosq.f32.pop %v353
    %v356 = vsinq.f32.pop %v353
    %vm357 = vweird.f32 %v57
    %v358 = vand.u32 %v354, 3
    %vm359 = vcmp.lt.s32.totalorder %v358, 2
    %vm360 = vcmp.eq.s32.totalorder %v358, 0
    %v361 = vxor.u32 %v356, 2147483648
    %v362 = vsel %vm360, %v355, %v361
    %vm363 = vcmp.eq.s32.totalorder %v358, 2
    %v364 = vxor.u32 %v355, 2147483648
    %v365 = vsel %vm363, %v364, %v356
    %v366 = vsel %vm359, %v362, %v365
    %v367 = vsel %vm357, nan, %v366
    %v368 = vand.u32 2147483647, %v58
    %vm369 = vcmp.le.f32.partialorder %v368, 0.7853982
    %vm370 = vcmp.lt.s32.totalorder %v58, 0
    %v371 = vand.u32 %v58, 2139095040
    %v372 = vshrl.u32 %v371, 23
    %v373 = vsub.s32 %v372, 127
    %v374 = vand.u32 2147483647, %v58
    %v375 = vand.u32 %v374, 8388607
    %v376 = vor.u32 %v375, 8388608
    %v377 = vsub.s32 0, %v376
    %v378 = vadd.s32 %v373, 1
    %vm379 = vcmp.gt.s32.totalorder %v378, 0
    %v380 = vsel %vm379, %v378, 0
    %v381 = vshrl.u32 %v380, 5
    %v382 = vand.u32 %v380, 31
    %v383 = vsub.s32 32, %v382
    %v384 = vshrl.u32 683565275, %v383
    %v385 = vshll.u32 683565275, %v382
    %v386 = vshrl.u32 2475754826, %v383
    %v387 = vor.u32 %v385, %v386
    %v388 = vshll.u32 2475754826, %v382
    %v389 = vshrl.u32 2131351028, %v383
    %v390 = vor.u32 %v388, %v389
    %v391 = vshll.u32 2131351028, %v382
    %v392 = vshrl.u32 2102212464, %v383
    %v393 = vor.u32 %v391, %v392
    %v394 = vshll.u32 2102212464, %v382
    %v395 = vshrl.u32 920167782, %v383
    %v396 = vor.u32 %v394, %v395
    %v397 = vshll.u32 920167782, %v382
    %v398 = vshrl.u32 1326507024, %v383
    %v399 = vor.u32 %v397, %v398
    %vm400 = vcmp.lt.s32.totalorder %v381, 1
    %vm401 = vcmp.lt.s32.totalorder %v381, 2
    %vm402 = vcmp.lt.s32.totalorder %v381, 3
    %vm403 = vcmp.lt.s32.totalorder %v381, 4
    %v404 = vsel %vm400, %v384, %v387
    %v405 = vsel %vm403, %v393, 2102212464
    %v406 = vsel %vm402, %v390, %v405
    %v407 = vsel %vm401, %v404, %v406
    %v408 = vsel %vm400, %v387, %v390
    %v409 = vsel %vm403, %v396, 920167782
    %v410 = vsel %vm402, %v393, %v409
    %v411 = vsel %vm401, %v408, %v410
    %v412 = vsel %vm400, %v390, %v393
    %v413 = vsel %vm403, %v399, 1326507024
    %v414 = vsel %vm402, %v396, %v413
    %v415 = vsel %vm401, %v412, %v414
    %v416 = vshll.u32 %v376, 8
    %v417 = vmul.u32.u64.compose %v416, %v415
    %v418 = vextract.low.u32 %v417
    %v419 = vextract.high.u32 %v417
    %v420 = vmul.u32.u64.compose %v416, %v411
    %v421 = vextract.low.u32 %v420
    %v422 = vextract.high.u32 %v420
    %v423 = vmul.u32 %v416, %v407
    %v424 = vadd.s32 %v419, %v421
    %vm425 = vc.u32 %v419, %v421
    %v426 = vadd.s32 %v422, 1
    %v427 = vsel %vm425, %v426, %v422
    %v428 = vadd.s32 %v423, %v427
    %v429 = vadd.s32 %v428, 536870912
    %v430 = vshrl.u32 %v429, 30
    %v431 = vshll.u32 %v430, 30
    %v432 = vsub.s32 %v428, %v431
    %vm433 = vcmp.lt.s32.totalorder %v432, 0
    %v434 = vsub.s32 0, %v432
    %v435 = vsel %vm433, %v434, %v432
    %v436 = vclz %v435
    %v437 = vsub.s32 %v436, 2
    %vm438 = vcmp.gt.s32.totalorder 0, %v437
    %v439 = vsel %vm438, 0, %v437
    %v440 = vsub.s32 32, %v439
    %v441 = vshll.u32 %v432, %v439
    %v442 = vshrl.u32 %v424, %v440
    %v443 = vor.u32 %v441, %v442
    %v444 = vsub.s32 4294967266, %v439
    %v445 = vadd.s32 %v444, 127
    %v446 = vshll.u32 %v445, 23
    %v447 = vor.u32 4788187, %v446
    %v448 = vand.u32 2147483647, %v447
    %v450 = vcvt.s32.f32 %v443
    %v451 = vmul.f32 %v450, %v448
    %v452 = vxor.u32 %v451, 2147483648
    %v453 = vsel %vm370, %v452, %v451
    %v454 = vsub.s32 4, %v430
    %v455 = vsel %vm370, %v454, %v430
    %v456 = vsel %vm369, %v58, %v453
    %v457 = vsel %vm369, 0, %v455
    %v458 = vcosq.f32.pop %v456
    %v459 = vsinq.f32.pop %v456
    %vm460 = vweird.f32 %v58
    %v461 = vand.u32 %v457, 3
    %vm462 = vcmp.lt.s32.totalorder %v461, 2
    %vm463 = vcmp.eq.s32.totalorder %v461, 0
    %v464 = vxor.u32 %v459, 2147483648
    %v465 = vsel %vm463, %v458, %v464
    %vm466 = vcmp.eq.s32.totalorder %v461, 2
    %v467 = vxor.u32 %v458, 2147483648
    %v468 = vsel %vm466, %v467, %v459
    %v469 = vsel %vm462, %v465, %v468
    %v470 = vsel %vm460, nan, %v469
    %v471 = vmul.f32 %v161, 1.4142135
    %v472 = vmul.f32 %v264, 1.4142135
    %v473 = vmul.f32 %v367, 1.4142135
    %v474 = vmul.f32 %v470, 1.4142135
    %475 = vst [vmem:[#allocation2] sm:$0xff] %v471
    %476 = vst [vmem:[#allocation2 + $0x8] sm:$0xff] %v472
    %477 = vst [vmem:[#allocation2 + $0x10] sm:$0xff] %v473
    %478 = vst [vmem:[#allocation2 + $0x18] sm:$0xff] %v474
    // Predicated region
    $region10: #{tpu_custom_call.1} parent=1 // pred_check
      _
    $region11: #{tpu_custom_call.1} parent=1 // pred_check_branch
      %480 = sbr.rel (0) target = $region13
    $region12: #{tpu_custom_call.1} parent=1 // pred_region
      %s482 = ssub.s32 512, 512
      %483 = vsyncadd [#allocation3], %s482
      %s484 = sshll.u32 [#allocation2], 4
      %s485 = int_to_ptr.vmem [resolvable:$true] %s484
      %490 = dma.vmem_to_hbm [thread:$0]  %s485, 512, %s2, [#allocation3], 256, 256, 16
    $region13: #{tpu_custom_call.1} parent=1 // pred_fallthru
      _
    // Predicated region
    $region14: #{tpu_custom_call.1} parent=1 // pred_check
      _
    $region15: #{tpu_custom_call.1} parent=1 // pred_check_branch
      %492 = sbr.rel (0) target = $region17
    $region16: #{tpu_custom_call.1} parent=1 // pred_region
      %493 = dma.done [#allocation3], 512
    $region17: #{tpu_custom_call.1} parent=1 // pred_fallthru
      _
    %494 = vsyncpa [#allocation3], 1

</llo_original>
